<compile_context>
chip_gen: v7x
topology: tpu7x:2x2x1
jax: 0.10.0
libtpu: 0.0.40
codegen_flags: <defaults>
</compile_context>

<pallas_src>
import math
import functools

import jax
import jax.numpy as jnp
from jax.experimental import pallas as pl
from jax.experimental.pallas import tpu as pltpu


_SQRT1_2 = 1.0 / math.sqrt(2.0)


def _gelu_exact(v):
    # PyTorch nn.GELU() default (approximate='none'): 0.5*x*(1+erf(x/sqrt(2))).
    # Kept exact for PyTorch parity; evaluated in f32.
    return 0.5 * v * (1.0 + jax.lax.erf(v * _SQRT1_2))


# ---------------------------------------------------------------------------
# Pallas kernel: whole MLP forward for one batch tile.
#   refs = (x_ref, w0, b0, w1, b1, ..., wL, bL, out_ref)
# Matmuls hit the MXU with bf16 operands / f32 accumulation; bias add and GELU
# run in f32 on VPU/EUP.  Python-level unrolled loop (no traced loop, so no
# repeated broadcast_in_dim of the bias).
# ---------------------------------------------------------------------------
def _mlp_kernel(*refs, n_layers, use_bf16):
    x_ref = refs[0]
    out_ref = refs[-1]
    param_refs = refs[1:-1]
    compute_dtype = jnp.bfloat16 if use_bf16 else jnp.float32

    y = x_ref[...].astype(compute_dtype)
    for i in range(n_layers):
        w = param_refs[2 * i][...]            # (fan_in_pad, fan_out_pad), bf16/f32
        b = param_refs[2 * i + 1][...]        # (1, fan_out_pad), f32
        acc = jnp.dot(y, w, preferred_element_type=jnp.float32) + b
        if i < n_layers - 1:                  # no activation after the last Linear
            y = _gelu_exact(acc).astype(compute_dtype)
        else:
            y = acc                           # f32 result of the last layer
    out_ref[...] = y.astype(out_ref.dtype)


def _round_up(n, m):
    return ((n + m - 1) // m) * m


# ---------------------------------------------------------------------------
# Wrapper: pads to lane-dense shapes, tiles the batch, and calls the kernel.
# ---------------------------------------------------------------------------
def dnn_forward(x, weights, biases, *, batch_tile=512, use_bf16_matmul=True):
    """x: (B, in_N) f32; weights[i]: (fan_in_i, fan_out_i); biases[i]: (fan_out_i,)"""
    assert len(weights) == len(biases)
    n_layers = len(weights)
    B, in_n = x.shape
    out_n = weights[-1].shape[1]

    # Feature dims padded to the 128-lane width; batch padded to a tile multiple.
    dims = [in_n] + [w.shape[1] for w in weights]
    pdims = [_round_up(d, 128) for d in dims]
    TB = min(_round_up(batch_tile, 8), _round_up(B, 8))
    Bp = _round_up(B, TB)

    param_dtype = jnp.bfloat16 if use_bf16_matmul else jnp.float32

    xp = jnp.zeros((Bp, pdims[0]), jnp.float32).at[:B, :in_n].set(
        x.astype(jnp.float32))

    args = [xp]
    in_specs = [pl.BlockSpec((TB, pdims[0]), lambda i: (i, 0))]
    for li, (w, b) in enumerate(zip(weights, biases)):
        fi, fo = w.shape
        wp = jnp.zeros((pdims[li], pdims[li + 1]), param_dtype)
        wp = wp.at[:fi, :fo].set(w.astype(param_dtype))
        bp = jnp.zeros((1, pdims[li + 1]), jnp.float32).at[0, :fo].set(
            b.astype(jnp.float32))
        args.append(wp)
        args.append(bp)
        # Constant block index: params stay resident in VMEM across batch tiles.
        in_specs.append(pl.BlockSpec((pdims[li], pdims[li + 1]), lambda i: (0, 0)))
        in_specs.append(pl.BlockSpec((1, pdims[li + 1]), lambda i: (0, 0)))

    out_spec = pl.BlockSpec((TB, pdims[-1]), lambda i: (i, 0))
    grid = (Bp // TB,)

    # Advisory cost estimate for the XLA scheduler.
    flops = 2 * Bp * sum(pdims[i] * pdims[i + 1] for i in range(n_layers))
    transcendentals = Bp * int(sum(pdims[1:-1]))     # one erf per hidden activation
    param_bytes = int(sum(a.size * a.dtype.itemsize for a in args[1:]))
    io_bytes = int(xp.size * 4 + Bp * pdims[-1] * 4)
    cost = pl.CostEstimate(flops=int(flops),
                           transcendentals=transcendentals,
                           bytes_accessed=param_bytes + io_bytes)

    # VMEM budget: double-buffered x/out tiles + resident params + f32 activation
    # scratch, with headroom; cap at 64 MiB so the same sizing is safe on v7x.
    act_bytes = 4 * TB * max(pdims)
    tile_bytes = 2 * (TB * pdims[0] * 4 + TB * pdims[-1] * 4)
    vmem_limit = int(min(max(2 * (tile_bytes + 2 * param_bytes + 4 * act_bytes),
                             16 * 1024 * 1024),
                         64 * 1024 * 1024))

    kernel = functools.partial(_mlp_kernel, n_layers=n_layers,
                               use_bf16=use_bf16_matmul)

    out_padded = pl.pallas_call(
        kernel,
        out_shape=jax.ShapeDtypeStruct((Bp, pdims[-1]), jnp.float32),
        grid=grid,
        in_specs=in_specs,
        out_specs=out_spec,
        compiler_params=pltpu.CompilerParams(
            dimension_semantics=("parallel",),
            vmem_limit_bytes=vmem_limit),
        cost_estimate=cost,
    )(*args)

    return out_padded[:B, :out_n]


# ---------------------------------------------------------------------------
# Deterministic parameter init matching param_init='default':
#   kaiming_uniform_(weight, a=sqrt(5)) -> U(-1/sqrt(fan_in), 1/sqrt(fan_in)),
#   bias = 0.
# ---------------------------------------------------------------------------
def init_dnn_params(key, in_n, depth, width, out_n):
    dims = [in_n] + [width] * depth + [out_n]
    weights, biases = [], []
    for i in range(len(dims) - 1):
        key, sub = jax.random.split(key)
        fan_in, fan_out = dims[i], dims[i + 1]
        bound = 1.0 / math.sqrt(fan_in)
        w = jax.random.uniform(sub, (fan_in, fan_out), jnp.float32,
                               minval=-bound, maxval=bound)
        b = jnp.zeros((fan_out,), jnp.float32)
        weights.append(w)
        biases.append(b)
    return weights, biases


if __name__ == "__main__":
    # Small shapes consistent with the module: DNN(in_N=8, depth=3, width=32, out_N=4)
    IN_N, DEPTH, WIDTH, OUT_N = 8, 3, 32, 4
    BATCH = 16

    key = jax.random.PRNGKey(0)
    key, xkey = jax.random.split(key)
    x = jax.random.normal(xkey, (BATCH, IN_N), jnp.float32)

    weights, biases = init_dnn_params(key, IN_N, DEPTH, WIDTH, OUT_N)

    y = dnn_forward(x, weights, biases)
    jax.block_until_ready(y)

    # Pure-JAX reference mirroring the kernel numerics (bf16 matmul operands,
    # f32 accumulation, f32 bias + exact-erf GELU).
    ref = x
    for i, (w, b) in enumerate(zip(weights, biases)):
        ref = jnp.dot(ref.astype(jnp.bfloat16), w.astype(jnp.bfloat16),
                      preferred_element_type=jnp.float32) + b
        if i < len(weights) - 1:
            ref = _gelu_exact(ref)

    assert y.shape == (BATCH, OUT_N)
    assert jnp.allclose(y, ref, atol=2e-3, rtol=2e-3), "mismatch vs. reference"

    print("KERNEL_OK")
</pallas_src>

<mosaic_0001>
module attributes {stable_mosaic.version = 11 : i64} {
  func.func @_mlp_kernel(%arg0: i32, %arg1: memref<16x128xf32, #tpu.memory_space<vmem>>, %arg2: memref<128x128xbf16, #tpu.memory_space<vmem>>, %arg3: memref<1x128xf32, #tpu.memory_space<vmem>>, %arg4: memref<128x128xbf16, #tpu.memory_space<vmem>>, %arg5: memref<1x128xf32, #tpu.memory_space<vmem>>, %arg6: memref<128x128xbf16, #tpu.memory_space<vmem>>, %arg7: memref<1x128xf32, #tpu.memory_space<vmem>>, %arg8: memref<128x128xbf16, #tpu.memory_space<vmem>>, %arg9: memref<1x128xf32, #tpu.memory_space<vmem>>, %arg10: memref<16x128xf32, #tpu.memory_space<vmem>>) attributes {dimension_semantics = [#tpu.dimension_semantics<parallel>], iteration_bounds = array<i64: 1>, scalar_prefetch = 0 : i64, scratch_operands = 0 : i64, tpu.core_type = #tpu.core_type<tc>, window_params = [{transform_indices = @transform_0, window_bounds = array<i64: 16, 128>}, {pipeline_mode = #tpu.pipeline_mode<synchronous>, transform_indices = @transform_1, window_bounds = array<i64: 128, 128>}, {pipeline_mode = #tpu.pipeline_mode<synchronous>, transform_indices = @transform_2, window_bounds = array<i64: 1, 128>}, {pipeline_mode = #tpu.pipeline_mode<synchronous>, transform_indices = @transform_3, window_bounds = array<i64: 128, 128>}, {pipeline_mode = #tpu.pipeline_mode<synchronous>, transform_indices = @transform_4, window_bounds = array<i64: 1, 128>}, {pipeline_mode = #tpu.pipeline_mode<synchronous>, transform_indices = @transform_5, window_bounds = array<i64: 128, 128>}, {pipeline_mode = #tpu.pipeline_mode<synchronous>, transform_indices = @transform_6, window_bounds = array<i64: 1, 128>}, {pipeline_mode = #tpu.pipeline_mode<synchronous>, transform_indices = @transform_7, window_bounds = array<i64: 128, 128>}, {pipeline_mode = #tpu.pipeline_mode<synchronous>, transform_indices = @transform_8, window_bounds = array<i64: 1, 128>}, {transform_indices = @transform_9, window_bounds = array<i64: 16, 128>}]} {
    %c0 = arith.constant 0 : index
    %c0_0 = arith.constant 0 : index
    %0 = vector.load %arg1[%c0, %c0_0] : memref<16x128xf32, #tpu.memory_space<vmem>>, vector<16x128xf32>
    %1 = arith.truncf %0 : vector<16x128xf32> to vector<16x128xbf16>
    %c0_1 = arith.constant 0 : index
    %c0_2 = arith.constant 0 : index
    %2 = vector.load %arg2[%c0_1, %c0_2] : memref<128x128xbf16, #tpu.memory_space<vmem>>, vector<128x128xbf16>
    %c0_3 = arith.constant 0 : index
    %c0_4 = arith.constant 0 : index
    %3 = vector.load %arg3[%c0_3, %c0_4] : memref<1x128xf32, #tpu.memory_space<vmem>>, vector<1x128xf32>
    %cst = arith.constant dense<0.000000e+00> : vector<16x128xf32>
    %4 = tpu.matmul %1, %2, %cst {dimension_numbers = #tpu.dot_dimension_numbers<[1], [0], [0], [1], [0, 0, 1, 1], [], []>} : vector<16x128xbf16>, vector<128x128xbf16>, vector<16x128xf32> -> vector<16x128xf32>
    %5 = vector.broadcast %3 : vector<1x128xf32> to vector<16x128xf32>
    %6 = arith.addf %4, %5 : vector<16x128xf32>
    %cst_5 = arith.constant 5.000000e-01 : f32
    %7 = vector.broadcast %cst_5 : f32 to vector<16x128xf32>
    %8 = arith.mulf %7, %6 : vector<16x128xf32>
    %cst_6 = arith.constant 0.707106769 : f32
    %9 = vector.broadcast %cst_6 : f32 to vector<16x128xf32>
    %10 = arith.mulf %6, %9 : vector<16x128xf32>
    %11 = math.erf %10 : vector<16x128xf32>
    %cst_7 = arith.constant 1.000000e+00 : f32
    %12 = vector.broadcast %cst_7 : f32 to vector<16x128xf32>
    %13 = arith.addf %12, %11 : vector<16x128xf32>
    %14 = arith.mulf %8, %13 : vector<16x128xf32>
    %15 = arith.truncf %14 : vector<16x128xf32> to vector<16x128xbf16>
    %c0_8 = arith.constant 0 : index
    %c0_9 = arith.constant 0 : index
    %16 = vector.load %arg4[%c0_8, %c0_9] : memref<128x128xbf16, #tpu.memory_space<vmem>>, vector<128x128xbf16>
    %c0_10 = arith.constant 0 : index
    %c0_11 = arith.constant 0 : index
    %17 = vector.load %arg5[%c0_10, %c0_11] : memref<1x128xf32, #tpu.memory_space<vmem>>, vector<1x128xf32>
    %cst_12 = arith.constant dense<0.000000e+00> : vector<16x128xf32>
    %18 = tpu.matmul %15, %16, %cst_12 {dimension_numbers = #tpu.dot_dimension_numbers<[1], [0], [0], [1], [0, 0, 1, 1], [], []>} : vector<16x128xbf16>, vector<128x128xbf16>, vector<16x128xf32> -> vector<16x128xf32>
    %19 = vector.broadcast %17 : vector<1x128xf32> to vector<16x128xf32>
    %20 = arith.addf %18, %19 : vector<16x128xf32>
    %cst_13 = arith.constant 5.000000e-01 : f32
    %21 = vector.broadcast %cst_13 : f32 to vector<16x128xf32>
    %22 = arith.mulf %21, %20 : vector<16x128xf32>
    %cst_14 = arith.constant 0.707106769 : f32
    %23 = vector.broadcast %cst_14 : f32 to vector<16x128xf32>
    %24 = arith.mulf %20, %23 : vector<16x128xf32>
    %25 = math.erf %24 : vector<16x128xf32>
    %cst_15 = arith.constant 1.000000e+00 : f32
    %26 = vector.broadcast %cst_15 : f32 to vector<16x128xf32>
    %27 = arith.addf %26, %25 : vector<16x128xf32>
    %28 = arith.mulf %22, %27 : vector<16x128xf32>
    %29 = arith.truncf %28 : vector<16x128xf32> to vector<16x128xbf16>
    %c0_16 = arith.constant 0 : index
    %c0_17 = arith.constant 0 : index
    %30 = vector.load %arg6[%c0_16, %c0_17] : memref<128x128xbf16, #tpu.memory_space<vmem>>, vector<128x128xbf16>
    %c0_18 = arith.constant 0 : index
    %c0_19 = arith.constant 0 : index
    %31 = vector.load %arg7[%c0_18, %c0_19] : memref<1x128xf32, #tpu.memory_space<vmem>>, vector<1x128xf32>
    %cst_20 = arith.constant dense<0.000000e+00> : vector<16x128xf32>
    %32 = tpu.matmul %29, %30, %cst_20 {dimension_numbers = #tpu.dot_dimension_numbers<[1], [0], [0], [1], [0, 0, 1, 1], [], []>} : vector<16x128xbf16>, vector<128x128xbf16>, vector<16x128xf32> -> vector<16x128xf32>
    %33 = vector.broadcast %31 : vector<1x128xf32> to vector<16x128xf32>
    %34 = arith.addf %32, %33 : vector<16x128xf32>
    %cst_21 = arith.constant 5.000000e-01 : f32
    %35 = vector.broadcast %cst_21 : f32 to vector<16x128xf32>
    %36 = arith.mulf %35, %34 : vector<16x128xf32>
    %cst_22 = arith.constant 0.707106769 : f32
    %37 = vector.broadcast %cst_22 : f32 to vector<16x128xf32>
    %38 = arith.mulf %34, %37 : vector<16x128xf32>
    %39 = math.erf %38 : vector<16x128xf32>
    %cst_23 = arith.constant 1.000000e+00 : f32
    %40 = vector.broadcast %cst_23 : f32 to vector<16x128xf32>
    %41 = arith.addf %40, %39 : vector<16x128xf32>
    %42 = arith.mulf %36, %41 : vector<16x128xf32>
    %43 = arith.truncf %42 : vector<16x128xf32> to vector<16x128xbf16>
    %c0_24 = arith.constant 0 : index
    %c0_25 = arith.constant 0 : index
    %44 = vector.load %arg8[%c0_24, %c0_25] : memref<128x128xbf16, #tpu.memory_space<vmem>>, vector<128x128xbf16>
    %c0_26 = arith.constant 0 : index
    %c0_27 = arith.constant 0 : index
    %45 = vector.load %arg9[%c0_26, %c0_27] : memref<1x128xf32, #tpu.memory_space<vmem>>, vector<1x128xf32>
    %cst_28 = arith.constant dense<0.000000e+00> : vector<16x128xf32>
    %46 = tpu.matmul %43, %44, %cst_28 {dimension_numbers = #tpu.dot_dimension_numbers<[1], [0], [0], [1], [0, 0, 1, 1], [], []>} : vector<16x128xbf16>, vector<128x128xbf16>, vector<16x128xf32> -> vector<16x128xf32>
    %47 = vector.broadcast %45 : vector<1x128xf32> to vector<16x128xf32>
    %48 = arith.addf %46, %47 : vector<16x128xf32>
    %c0_29 = arith.constant 0 : index
    %c0_30 = arith.constant 0 : index
    %49 = vector.load %arg10[%c0_29, %c0_30] : memref<16x128xf32, #tpu.memory_space<vmem>>, vector<16x128xf32>
    tpu.vector_store %arg10[%c0_29, %c0_30], %48 {strides = array<i32>} : memref<16x128xf32, #tpu.memory_space<vmem>>, vector<16x128xf32>,
    return
  }
  func.func @transform_0(%arg0: i32) -> (i32, i32) {
    %c0_i32 = arith.constant 0 : i32
    %c0_i32_0 = arith.constant 0 : i32
    return %arg0, %c0_i32 : i32, i32
  }
  func.func @transform_1(%arg0: i32) -> (i32, i32) {
    %c0_i32 = arith.constant 0 : i32
    %c0_i32_0 = arith.constant 0 : i32
    %c0_i32_1 = arith.constant 0 : i32
    return %c0_i32, %c0_i32_0 : i32, i32
  }
  func.func @transform_2(%arg0: i32) -> (i32, i32) {
    %c0_i32 = arith.constant 0 : i32
    %c0_i32_0 = arith.constant 0 : i32
    %c0_i32_1 = arith.constant 0 : i32
    return %c0_i32, %c0_i32_0 : i32, i32
  }
  func.func @transform_3(%arg0: i32) -> (i32, i32) {
    %c0_i32 = arith.constant 0 : i32
    %c0_i32_0 = arith.constant 0 : i32
    %c0_i32_1 = arith.constant 0 : i32
    return %c0_i32, %c0_i32_0 : i32, i32
  }
  func.func @transform_4(%arg0: i32) -> (i32, i32) {
    %c0_i32 = arith.constant 0 : i32
    %c0_i32_0 = arith.constant 0 : i32
    %c0_i32_1 = arith.constant 0 : i32
    return %c0_i32, %c0_i32_0 : i32, i32
  }
  func.func @transform_5(%arg0: i32) -> (i32, i32) {
    %c0_i32 = arith.constant 0 : i32
    %c0_i32_0 = arith.constant 0 : i32
    %c0_i32_1 = arith.constant 0 : i32
    return %c0_i32, %c0_i32_0 : i32, i32
  }
  func.func @transform_6(%arg0: i32) -> (i32, i32) {
    %c0_i32 = arith.constant 0 : i32
    %c0_i32_0 = arith.constant 0 : i32
    %c0_i32_1 = arith.constant 0 : i32
    return %c0_i32, %c0_i32_0 : i32, i32
  }
  func.func @transform_7(%arg0: i32) -> (i32, i32) {
    %c0_i32 = arith.constant 0 : i32
    %c0_i32_0 = arith.constant 0 : i32
    %c0_i32_1 = arith.constant 0 : i32
    return %c0_i32, %c0_i32_0 : i32, i32
  }
  func.func @transform_8(%arg0: i32) -> (i32, i32) {
    %c0_i32 = arith.constant 0 : i32
    %c0_i32_0 = arith.constant 0 : i32
    %c0_i32_1 = arith.constant 0 : i32
    return %c0_i32, %c0_i32_0 : i32, i32
  }
  func.func @transform_9(%arg0: i32) -> (i32, i32) {
    %c0_i32 = arith.constant 0 : i32
    %c0_i32_0 = arith.constant 0 : i32
    return %arg0, %c0_i32 : i32, i32
  }
}

</mosaic_0001>

<llo_original>
// kernel: tpu_custom_call.1
$region0: #{tpu_custom_call.1}
  #allocation0 [shape = 'u32[]', space=smem, size = 0x4, offset = 0x4, fixed_abs, tag = 'smem constant byte address 0x4 - core index']
  #allocation1 [shape = 'u32[144,128]{1,0:T(1,128)}', space=vmem, size = 0x12000, scoped, tag = 'internal scratch']
  %s0 = inlined_call_operand.hbm [shape: f32[16,128], index: 0, kind: input, shape index: {}]
  %s1 = inlined_call_operand.hbm [shape: bf16[128,128], index: 1, kind: input, shape index: {}]
  %s2 = inlined_call_operand.vmem [shape: f32[1,128], index: 2, kind: input, shape index: {}]
  %s3 = inlined_call_operand.hbm [shape: bf16[128,128], index: 3, kind: input, shape index: {}]
  %s4 = inlined_call_operand.vmem [shape: f32[1,128], index: 4, kind: input, shape index: {}]
  %s5 = inlined_call_operand.hbm [shape: bf16[128,128], index: 5, kind: input, shape index: {}]
  %s6 = inlined_call_operand.vmem [shape: f32[1,128], index: 6, kind: input, shape index: {}]
  %s7 = inlined_call_operand.hbm [shape: bf16[128,128], index: 7, kind: input, shape index: {}]
  %s8 = inlined_call_operand.vmem [shape: f32[1,128], index: 8, kind: input, shape index: {}]
  %s9 = inlined_call_operand.hbm [shape: f32[16,128], index: 9, kind: output, shape index: {}]
  %s10 = sld [smem:[#allocation0]]
  $region66: #{tpu_custom_call.1} parent=0
    _
  %s12 = ssub.s32 1, %s10
  %s13 = scalar_select 0, %s12, %s10
  $region1: #{tpu_custom_call.1} parent=0
    #allocation2 [shape = 'u8[8192]{0}', space=vmem, size = 0x2000, scoped, tag = 'input window, operand 0, single buffered']
    #allocation3 [shape = 's32[1]{0}', space=sflag, size = 0x4, scoped, tag = 'scoped memory for tpu_custom_call.1']
    #allocation4 [shape = 's32[1]{0}', space=sflag, size = 0x4, scoped, tag = 'scoped memory for tpu_custom_call.1']
    #allocation5 [shape = 'u8[32768]{0}', space=vmem, size = 0x8000, scoped, tag = 'input window, operand 1, single buffered']
    #allocation6 [shape = 's32[1]{0}', space=sflag, size = 0x4, scoped, tag = 'scoped memory for tpu_custom_call.1']
    #allocation7 [shape = 'u8[32768]{0}', space=vmem, size = 0x8000, scoped, tag = 'input window, operand 3, single buffered']
    #allocation8 [shape = 'u8[32768]{0}', space=vmem, size = 0x8000, scoped, tag = 'input window, operand 5, single buffered']
    #allocation9 [shape = 's32[1]{0}', space=sflag, size = 0x4, scoped, tag = 'scoped memory for tpu_custom_call.1']
    #allocation10 [shape = 'u8[32768]{0}', space=vmem, size = 0x8000, scoped, tag = 'input window, operand 7, single buffered']
    #allocation11 [shape = 'u8[8192]{0}', space=vmem, size = 0x2000, scoped, tag = 'output window, operand 0, single buffered']
    %14 = vsyncpa [#allocation3], 0
    %15 = vsyncpa [#allocation6], 0
    %16 = vsyncpa [#allocation9], 0
    %17 = vsyncpa [#allocation4], 0
    // Predicated region
    $region2: #{tpu_custom_call.1} parent=1 // pred_check
      _
    $region3: #{tpu_custom_call.1} parent=1 // pred_check_branch
      %19 = sbr.rel (0) target = $region5
    $region4: #{tpu_custom_call.1} parent=1 // pred_region
      %s21 = ssub.s32 256, 256
      %22 = vsyncadd [#allocation3], %s21
      %s23 = sshll.u32 [#allocation2], 4
      %s24 = int_to_ptr.vmem [resolvable:$true] %s23
      %29 = dma.hbm_to_vmem [thread:$0]  %s0, 256, %s24, [#allocation3], 128, 128, 8
    $region5: #{tpu_custom_call.1} parent=1 // pred_fallthru
      _
    // Predicated region
    $region6: #{tpu_custom_call.1} parent=1 // pred_check
      _
    $region7: #{tpu_custom_call.1} parent=1 // pred_check_branch
      %31 = sbr.rel (0) target = $region9
    $region8: #{tpu_custom_call.1} parent=1 // pred_region
      %s33 = ssub.s32 1024, 1024
      %34 = vsyncadd [#allocation6], %s33
      %s35 = sshll.u32 [#allocation5], 4
      %s36 = int_to_ptr.vmem [resolvable:$true] %s35
      %41 = dma.hbm_to_vmem [thread:$0]  %s1, 1024, %s36, [#allocation6], 64, 64, 4
    $region9: #{tpu_custom_call.1} parent=1 // pred_fallthru
      _
    // Predicated region
    $region10: #{tpu_custom_call.1} parent=1 // pred_check
      _
    $region11: #{tpu_custom_call.1} parent=1 // pred_check_branch
      %43 = sbr.rel (0) target = $region13
    $region12: #{tpu_custom_call.1} parent=1 // pred_region
      _
    $region13: #{tpu_custom_call.1} parent=1 // pred_fallthru
      _
    // Predicated region
    $region14: #{tpu_custom_call.1} parent=1 // pred_check
      _
    $region15: #{tpu_custom_call.1} parent=1 // pred_check_branch
      %45 = sbr.rel (0) target = $region17
    $region16: #{tpu_custom_call.1} parent=1 // pred_region
      %s47 = ssub.s32 1024, 1024
      %48 = vsyncadd [#allocation6], %s47
      %s49 = sshll.u32 [#allocation7], 4
      %s50 = int_to_ptr.vmem [resolvable:$true] %s49
      %55 = dma.hbm_to_vmem [thread:$0]  %s3, 1024, %s50, [#allocation6], 64, 64, 4
    $region17: #{tpu_custom_call.1} parent=1 // pred_fallthru
      _
    // Predicated region
    $region18: #{tpu_custom_call.1} parent=1 // pred_check
      _
    $region19: #{tpu_custom_call.1} parent=1 // pred_check_branch
      %57 = sbr.rel (0) target = $region21
    $region20: #{tpu_custom_call.1} parent=1 // pred_region
      _
    $region21: #{tpu_custom_call.1} parent=1 // pred_fallthru
      _
    // Predicated region
    $region22: #{tpu_custom_call.1} parent=1 // pred_check
      _
    $region23: #{tpu_custom_call.1} parent=1 // pred_check_branch
      %59 = sbr.rel (0) target = $region25
    $region24: #{tpu_custom_call.1} parent=1 // pred_region
      %s61 = ssub.s32 1024, 1024
      %62 = vsyncadd [#allocation9], %s61
      %s63 = sshll.u32 [#allocation8], 4
      %s64 = int_to_ptr.vmem [resolvable:$true] %s63
      %69 = dma.hbm_to_vmem [thread:$0]  %s5, 1024, %s64, [#allocation9], 64, 64, 4
    $region25: #{tpu_custom_call.1} parent=1 // pred_fallthru
      _
    // Predicated region
    $region26: #{tpu_custom_call.1} parent=1 // pred_check
      _
    $region27: #{tpu_custom_call.1} parent=1 // pred_check_branch
      %71 = sbr.rel (0) target = $region29
    $region28: #{tpu_custom_call.1} parent=1 // pred_region
      _
    $region29: #{tpu_custom_call.1} parent=1 // pred_fallthru
      _
    // Predicated region
    $region30: #{tpu_custom_call.1} parent=1 // pred_check
      _
    $region31: #{tpu_custom_call.1} parent=1 // pred_check_branch
      %73 = sbr.rel (0) target = $region33
    $region32: #{tpu_custom_call.1} parent=1 // pred_region
      %s75 = ssub.s32 1024, 1024
      %76 = vsyncadd [#allocation9], %s75
      %s77 = sshll.u32 [#allocation10], 4
      %s78 = int_to_ptr.vmem [resolvable:$true] %s77
      %83 = dma.hbm_to_vmem [thread:$0]  %s7, 1024, %s78, [#allocation9], 64, 64, 4
    $region33: #{tpu_custom_call.1} parent=1 // pred_fallthru
      _
    // Predicated region
    $region34: #{tpu_custom_call.1} parent=1 // pred_check
      _
    $region35: #{tpu_custom_call.1} parent=1 // pred_check_branch
      %85 = sbr.rel (0) target = $region37
    $region36: #{tpu_custom_call.1} parent=1 // pred_region
      _
    $region37: #{tpu_custom_call.1} parent=1 // pred_fallthru
      _
    // Predicated region
    $region38: #{tpu_custom_call.1} parent=1 // pred_check
      _
    $region39: #{tpu_custom_call.1} parent=1 // pred_check_branch
      %87 = sbr.rel (0) target = $region41
    $region40: #{tpu_custom_call.1} parent=1 // pred_region
      %88 = dma.done [#allocation3], 256
    $region41: #{tpu_custom_call.1} parent=1 // pred_fallthru
      _
    // Predicated region
    $region42: #{tpu_custom_call.1} parent=1 // pred_check
      _
    $region43: #{tpu_custom_call.1} parent=1 // pred_check_branch
      %90 = sbr.rel (0) target = $region45
    $region44: #{tpu_custom_call.1} parent=1 // pred_region
      %91 = dma.done [#allocation6], 1024
    $region45: #{tpu_custom_call.1} parent=1 // pred_fallthru
      _
    // Predicated region
    $region46: #{tpu_custom_call.1} parent=1 // pred_check
      _
    $region47: #{tpu_custom_call.1} parent=1 // pred_check_branch
      %93 = sbr.rel (0) target = $region49
    $region48: #{tpu_custom_call.1} parent=1 // pred_region
      %94 = dma.done [#allocation6], 1024
    $region49: #{tpu_custom_call.1} parent=1 // pred_fallthru
      _
    // Predicated region
    $region50: #{tpu_custom_call.1} parent=1 // pred_check
      _
    $region51: #{tpu_custom_call.1} parent=1 // pred_check_branch
      %96 = sbr.rel (0) target = $region53
    $region52: #{tpu_custom_call.1} parent=1 // pred_region
      %97 = dma.done [#allocation9], 1024
    $region53: #{tpu_custom_call.1} parent=1 // pred_fallthru
      _
    // Predicated region
    $region54: #{tpu_custom_call.1} parent=1 // pred_check
      _
    $region55: #{tpu_custom_call.1} parent=1 // pred_check_branch
      %99 = sbr.rel (0) target = $region57
    $region56: #{tpu_custom_call.1} parent=1 // pred_region
      %100 = dma.done [#allocation9], 1024
    $region57: #{tpu_custom_call.1} parent=1 // pred_fallthru
      _
    %v102 = vld [vmem:[#allocation2] sm:$0xff]
    %v103 = vld [vmem:[#allocation2 + $0x8] sm:$0xff]
    %v104 = vpack.c.bf16 %v103, %v102
    %v105 = vld [vmem:[#allocation5] sm:$0xf]
    %v106 = vld [vmem:[#allocation5 + $0x4] sm:$0xf]
    %v107 = vld [vmem:[#allocation5 + $0x8] sm:$0xf]
    %v108 = vld [vmem:[#allocation5 + $0xc] sm:$0xf]
    %v109 = vld [vmem:[#allocation5 + $0x10] sm:$0xf]
    %v110 = vld [vmem:[#allocation5 + $0x14] sm:$0xf]
    %v111 = vld [vmem:[#allocation5 + $0x18] sm:$0xf]
    %v112 = vld [vmem:[#allocation5 + $0x1c] sm:$0xf]
    %v113 = vld [vmem:[#allocation5 + $0x20] sm:$0xf]
    %v114 = vld [vmem:[#allocation5 + $0x24] sm:$0xf]
    %v115 = vld [vmem:[#allocation5 + $0x28] sm:$0xf]
    %v116 = vld [vmem:[#allocation5 + $0x2c] sm:$0xf]
    %v117 = vld [vmem:[#allocation5 + $0x30] sm:$0xf]
    %v118 = vld [vmem:[#allocation5 + $0x34] sm:$0xf]
    %v119 = vld [vmem:[#allocation5 + $0x38] sm:$0xf]
    %v120 = vld [vmem:[#allocation5 + $0x3c] sm:$0xf]
    %v121 = vld [vmem:[%s2] sm:$0x1]
    %v123 = vlaneseq
    %v124 = vshrl.u32 %v123, 7
    %v125 = vsub.s32 0, %v124
    %v126 = vrot.slane %v121, %v125
    %v144 = vunpack.c.l.b16 %v105
    %v145 = vunpack.c.l.b16 %v106
    %v146 = vunpack.c.l.b16 %v107
    %v147 = vunpack.c.l.b16 %v108
    %v148 = vunpack.c.l.b16 %v109
    %v149 = vunpack.c.l.b16 %v110
    %v150 = vunpack.c.l.b16 %v111
    %v151 = vunpack.c.l.b16 %v112
    %v152 = vunpack.c.l.b16 %v113
    %v153 = vunpack.c.l.b16 %v114
    %v154 = vunpack.c.l.b16 %v115
    %v155 = vunpack.c.l.b16 %v116
    %v156 = vunpack.c.l.b16 %v117
    %v157 = vunpack.c.l.b16 %v118
    %v158 = vunpack.c.l.b16 %v119
    %v159 = vunpack.c.l.b16 %v120
    %v160 = vpack.c.b16 %v145, %v144
    %v161 = vpack.c.b16 %v147, %v146
    %v162 = vpack.c.b16 %v149, %v148
    %v163 = vpack.c.b16 %v151, %v150
    %v164 = vpack.c.b16 %v153, %v152
    %v165 = vpack.c.b16 %v155, %v154
    %v166 = vpack.c.b16 %v157, %v156
    %v167 = vpack.c.b16 %v159, %v158
    %176 = vmatprep.subr.bf16.mxu0 0
    %177 = vmatpush1.bf16.msra.mxu0 %v160
    %178 = vmatprep.subr.bf16.mxu0 0
    %179 = vmatpush1.bf16.msra.mxu0 %v161
    %180 = vmatprep.subr.bf16.mxu0 0
    %181 = vmatpush1.bf16.msra.mxu0 %v162
    %182 = vmatprep.subr.bf16.mxu0 0
    %183 = vmatpush1.bf16.msra.mxu0 %v163
    %184 = vmatprep.subr.bf16.mxu0 0
    %185 = vmatpush1.bf16.msra.mxu0 %v164
    %186 = vmatprep.subr.bf16.mxu0 0
    %187 = vmatpush1.bf16.msra.mxu0 %v165
    %188 = vmatprep.subr.bf16.mxu0 0
    %189 = vmatpush1.bf16.msra.mxu0 %v166
    %190 = vmatprep.subr.bf16.mxu0 0
    %191 = vmatpush1.bf16.msra.mxu0 %v167
    %192 = vmatprep.subr.bf16.mxu0 0
    %193 = vmatpush1.bf16.msra.mxu0 0
    %194 = vmatprep.subr.bf16.mxu0 0
    %195 = vmatpush1.bf16.msra.mxu0 0
    %196 = vmatprep.subr.bf16.mxu0 0
    %197 = vmatpush1.bf16.msra.mxu0 0
    %198 = vmatprep.subr.bf16.mxu0 0
    %199 = vmatpush1.bf16.msra.mxu0 0
    %200 = vmatprep.subr.bf16.mxu0 0
    %201 = vmatpush1.bf16.msra.mxu0 0
    %202 = vmatprep.subr.bf16.mxu0 0
    %203 = vmatpush1.bf16.msra.mxu0 0
    %204 = vmatprep.subr.bf16.mxu0 0
    %205 = vmatpush1.bf16.msra.mxu0 0
    %206 = vmatprep.subr.bf16.mxu0 0
    %207 = vmatpush1.bf16.msra.mxu0 0
    %208 = vmatprep.mubr.bf16.mxu0 0
    %209 = vmatmul.mubr.bf16.gmra.mrb[0].mxu0 %v104
    %v210 = vpop.f32.mrb[0].mxu0
    %v211 = vadd.f32 %v126, %v210
    %v212 = vpop.f32.mrb[0].mxu0
    %v213 = vpop.f32.mrb[0].mxu0
    %v214 = vadd.f32 %v126, %v213
    %v215 = vpop.f32.mrb[0].mxu0
    %216 = vdwg.mxu0
    %v217 = vmul.f32 %v211, 0.5
    %v218 = vmul.f32 %v214, 0.5
    %v219 = vmul.f32 %v211, 0.70710677
    %v220 = vmul.f32 %v214, 0.70710677
    %v221 = verf.f32.pop %v219
    %v222 = verf.f32.pop %v220
    %v223 = vadd.f32 %v221, 1.0
    %v224 = vadd.f32 %v222, 1.0
    %v225 = vmul.f32 %v217, %v223
    %v226 = vmul.f32 %v218, %v224
    %v227 = vpack.c.bf16 %v226, %v225
    %v228 = vld [vmem:[#allocation7] sm:$0xf]
    %v229 = vld [vmem:[#allocation7 + $0x4] sm:$0xf]
    %v230 = vld [vmem:[#allocation7 + $0x8] sm:$0xf]
    %v231 = vld [vmem:[#allocation7 + $0xc] sm:$0xf]
    %v232 = vld [vmem:[#allocation7 + $0x10] sm:$0xf]
    %v233 = vld [vmem:[#allocation7 + $0x14] sm:$0xf]
    %v234 = vld [vmem:[#allocation7 + $0x18] sm:$0xf]
    %v235 = vld [vmem:[#allocation7 + $0x1c] sm:$0xf]
    %v236 = vld [vmem:[#allocation7 + $0x20] sm:$0xf]
    %v237 = vld [vmem:[#allocation7 + $0x24] sm:$0xf]
    %v238 = vld [vmem:[#allocation7 + $0x28] sm:$0xf]
    %v239 = vld [vmem:[#allocation7 + $0x2c] sm:$0xf]
    %v240 = vld [vmem:[#allocation7 + $0x30] sm:$0xf]
    %v241 = vld [vmem:[#allocation7 + $0x34] sm:$0xf]
    %v242 = vld [vmem:[#allocation7 + $0x38] sm:$0xf]
    %v243 = vld [vmem:[#allocation7 + $0x3c] sm:$0xf]
    %v244 = vld [vmem:[%s4] sm:$0x1]
    %v246 = vlaneseq
    %v247 = vshrl.u32 %v246, 7
    %v248 = vsub.s32 0, %v247
    %v249 = vrot.slane %v244, %v248
    %v267 = vunpack.c.l.b16 %v228
    %v268 = vunpack.c.l.b16 %v229
    %v269 = vunpack.c.l.b16 %v230
    %v270 = vunpack.c.l.b16 %v231
    %v271 = vunpack.c.l.b16 %v232
    %v272 = vunpack.c.l.b16 %v233
    %v273 = vunpack.c.l.b16 %v234
    %v274 = vunpack.c.l.b16 %v235
    %v275 = vunpack.c.l.b16 %v236
    %v276 = vunpack.c.l.b16 %v237
    %v277 = vunpack.c.l.b16 %v238
    %v278 = vunpack.c.l.b16 %v239
    %v279 = vunpack.c.l.b16 %v240
    %v280 = vunpack.c.l.b16 %v241
    %v281 = vunpack.c.l.b16 %v242
    %v282 = vunpack.c.l.b16 %v243
    %v283 = vpack.c.b16 %v268, %v267
    %v284 = vpack.c.b16 %v270, %v269
    %v285 = vpack.c.b16 %v272, %v271
    %v286 = vpack.c.b16 %v274, %v273
    %v287 = vpack.c.b16 %v276, %v275
    %v288 = vpack.c.b16 %v278, %v277
    %v289 = vpack.c.b16 %v280, %v279
    %v290 = vpack.c.b16 %v282, %v281
    %299 = vmatprep.subr.bf16.mxu0 0
    %300 = vmatpush1.bf16.msra.mxu0 %v283
    %301 = vmatprep.subr.bf16.mxu0 0
    %302 = vmatpush1.bf16.msra.mxu0 %v284
    %303 = vmatprep.subr.bf16.mxu0 0
    %304 = vmatpush1.bf16.msra.mxu0 %v285
    %305 = vmatprep.subr.bf16.mxu0 0
    %306 = vmatpush1.bf16.msra.mxu0 %v286
    %307 = vmatprep.subr.bf16.mxu0 0
    %308 = vmatpush1.bf16.msra.mxu0 %v287
    %309 = vmatprep.subr.bf16.mxu0 0
    %310 = vmatpush1.bf16.msra.mxu0 %v288
    %311 = vmatprep.subr.bf16.mxu0 0
    %312 = vmatpush1.bf16.msra.mxu0 %v289
    %313 = vmatprep.subr.bf16.mxu0 0
    %314 = vmatpush1.bf16.msra.mxu0 %v290
    %315 = vmatprep.subr.bf16.mxu0 0
    %316 = vmatpush1.bf16.msra.mxu0 0
    %317 = vmatprep.subr.bf16.mxu0 0
    %318 = vmatpush1.bf16.msra.mxu0 0
    %319 = vmatprep.subr.bf16.mxu0 0
    %320 = vmatpush1.bf16.msra.mxu0 0
    %321 = vmatprep.subr.bf16.mxu0 0
    %322 = vmatpush1.bf16.msra.mxu0 0
    %323 = vmatprep.subr.bf16.mxu0 0
    %324 = vmatpush1.bf16.msra.mxu0 0
    %325 = vmatprep.subr.bf16.mxu0 0
    %326 = vmatpush1.bf16.msra.mxu0 0
    %327 = vmatprep.subr.bf16.mxu0 0
    %328 = vmatpush1.bf16.msra.mxu0 0
    %329 = vmatprep.subr.bf16.mxu0 0
    %330 = vmatpush1.bf16.msra.mxu0 0
    %331 = vmatprep.mubr.bf16.mxu0 0
    %332 = vmatmul.mubr.bf16.gmra.mrb[0].mxu0 %v227
    %v333 = vpop.f32.mrb[0].mxu0
    %v334 = vadd.f32 %v249, %v333
    %v335 = vpop.f32.mrb[0].mxu0
    %v336 = vpop.f32.mrb[0].mxu0
    %v337 = vadd.f32 %v249, %v336
    %v338 = vpop.f32.mrb[0].mxu0
    %339 = vdwg.mxu0
    %v340 = vmul.f32 %v334, 0.5
    %v341 = vmul.f32 %v337, 0.5
    %v342 = vmul.f32 %v334, 0.70710677
    %v343 = vmul.f32 %v337, 0.70710677
    %v344 = verf.f32.pop %v342
    %v345 = verf.f32.pop %v343
    %v346 = vadd.f32 %v344, 1.0
    %v347 = vadd.f32 %v345, 1.0
    %v348 = vmul.f32 %v340, %v346
    %v349 = vmul.f32 %v341, %v347
    %v350 = vpack.c.bf16 %v349, %v348
    %v351 = vld [vmem:[#allocation8] sm:$0xf]
    %v352 = vld [vmem:[#allocation8 + $0x4] sm:$0xf]
    %v353 = vld [vmem:[#allocation8 + $0x8] sm:$0xf]
    %v354 = vld [vmem:[#allocation8 + $0xc] sm:$0xf]
    %v355 = vld [vmem:[#allocation8 + $0x10] sm:$0xf]
    %v356 = vld [vmem:[#allocation8 + $0x14] sm:$0xf]
    %v357 = vld [vmem:[#allocation8 + $0x18] sm:$0xf]
    %v358 = vld [vmem:[#allocation8 + $0x1c] sm:$0xf]
    %v359 = vld [vmem:[#allocation8 + $0x20] sm:$0xf]
    %v360 = vld [vmem:[#allocation8 + $0x24] sm:$0xf]
    %v361 = vld [vmem:[#allocation8 + $0x28] sm:$0xf]
    %v362 = vld [vmem:[#allocation8 + $0x2c] sm:$0xf]
    %v363 = vld [vmem:[#allocation8 + $0x30] sm:$0xf]
    %v364 = vld [vmem:[#allocation8 + $0x34] sm:$0xf]
    %v365 = vld [vmem:[#allocation8 + $0x38] sm:$0xf]
    %v366 = vld [vmem:[#allocation8 + $0x3c] sm:$0xf]
    %v367 = vld [vmem:[%s6] sm:$0x1]
    %v369 = vlaneseq
    %v370 = vshrl.u32 %v369, 7
    %v371 = vsub.s32 0, %v370
    %v372 = vrot.slane %v367, %v371
    %v390 = vunpack.c.l.b16 %v351
    %v391 = vunpack.c.l.b16 %v352
    %v392 = vunpack.c.l.b16 %v353
    %v393 = vunpack.c.l.b16 %v354
    %v394 = vunpack.c.l.b16 %v355
    %v395 = vunpack.c.l.b16 %v356
    %v396 = vunpack.c.l.b16 %v357
    %v397 = vunpack.c.l.b16 %v358
    %v398 = vunpack.c.l.b16 %v359
    %v399 = vunpack.c.l.b16 %v360
    %v400 = vunpack.c.l.b16 %v361
    %v401 = vunpack.c.l.b16 %v362
    %v402 = vunpack.c.l.b16 %v363
    %v403 = vunpack.c.l.b16 %v364
    %v404 = vunpack.c.l.b16 %v365
    %v405 = vunpack.c.l.b16 %v366
    %v406 = vpack.c.b16 %v391, %v390
    %v407 = vpack.c.b16 %v393, %v392
    %v408 = vpack.c.b16 %v395, %v394
    %v409 = vpack.c.b16 %v397, %v396
    %v410 = vpack.c.b16 %v399, %v398
    %v411 = vpack.c.b16 %v401, %v400
    %v412 = vpack.c.b16 %v403, %v402
    %v413 = vpack.c.b16 %v405, %v404
    %422 = vmatprep.subr.bf16.mxu0 0
    %423 = vmatpush1.bf16.msra.mxu0 %v406
    %424 = vmatprep.subr.bf16.mxu0 0
    %425 = vmatpush1.bf16.msra.mxu0 %v407
    %426 = vmatprep.subr.bf16.mxu0 0
    %427 = vmatpush1.bf16.msra.mxu0 %v408
    %428 = vmatprep.subr.bf16.mxu0 0
    %429 = vmatpush1.bf16.msra.mxu0 %v409
    %430 = vmatprep.subr.bf16.mxu0 0
    %431 = vmatpush1.bf16.msra.mxu0 %v410
    %432 = vmatprep.subr.bf16.mxu0 0
    %433 = vmatpush1.bf16.msra.mxu0 %v411
    %434 = vmatprep.subr.bf16.mxu0 0
    %435 = vmatpush1.bf16.msra.mxu0 %v412
    %436 = vmatprep.subr.bf16.mxu0 0
    %437 = vmatpush1.bf16.msra.mxu0 %v413
    %438 = vmatprep.subr.bf16.mxu0 0
    %439 = vmatpush1.bf16.msra.mxu0 0
    %440 = vmatprep.subr.bf16.mxu0 0
    %441 = vmatpush1.bf16.msra.mxu0 0
    %442 = vmatprep.subr.bf16.mxu0 0
    %443 = vmatpush1.bf16.msra.mxu0 0
    %444 = vmatprep.subr.bf16.mxu0 0
    %445 = vmatpush1.bf16.msra.mxu0 0
    %446 = vmatprep.subr.bf16.mxu0 0
    %447 = vmatpush1.bf16.msra.mxu0 0
    %448 = vmatprep.subr.bf16.mxu0 0
    %449 = vmatpush1.bf16.msra.mxu0 0
    %450 = vmatprep.subr.bf16.mxu0 0
    %451 = vmatpush1.bf16.msra.mxu0 0
    %452 = vmatprep.subr.bf16.mxu0 0
    %453 = vmatpush1.bf16.msra.mxu0 0
    %454 = vmatprep.mubr.bf16.mxu0 0
    %455 = vmatmul.mubr.bf16.gmra.mrb[0].mxu0 %v350
    %v456 = vpop.f32.mrb[0].mxu0
    %v457 = vadd.f32 %v372, %v456
    %v458 = vpop.f32.mrb[0].mxu0
    %v459 = vpop.f32.mrb[0].mxu0
    %v460 = vadd.f32 %v372, %v459
    %v461 = vpop.f32.mrb[0].mxu0
    %462 = vdwg.mxu0
    %v463 = vmul.f32 %v457, 0.5
    %v464 = vmul.f32 %v460, 0.5
    %v465 = vmul.f32 %v457, 0.70710677
    %v466 = vmul.f32 %v460, 0.70710677
    %v467 = verf.f32.pop %v465
    %v468 = verf.f32.pop %v466
    %v469 = vadd.f32 %v467, 1.0
    %v470 = vadd.f32 %v468, 1.0
    %v471 = vmul.f32 %v463, %v469
    %v472 = vmul.f32 %v464, %v470
    %v473 = vpack.c.bf16 %v472, %v471
    %v474 = vld [vmem:[#allocation10] sm:$0xf]
    %v475 = vld [vmem:[#allocation10 + $0x4] sm:$0xf]
    %v476 = vld [vmem:[#allocation10 + $0x8] sm:$0xf]
    %v477 = vld [vmem:[#allocation10 + $0xc] sm:$0xf]
    %v478 = vld [vmem:[#allocation10 + $0x10] sm:$0xf]
    %v479 = vld [vmem:[#allocation10 + $0x14] sm:$0xf]
    %v480 = vld [vmem:[#allocation10 + $0x18] sm:$0xf]
    %v481 = vld [vmem:[#allocation10 + $0x1c] sm:$0xf]
    %v482 = vld [vmem:[#allocation10 + $0x20] sm:$0xf]
    %v483 = vld [vmem:[#allocation10 + $0x24] sm:$0xf]
    %v484 = vld [vmem:[#allocation10 + $0x28] sm:$0xf]
    %v485 = vld [vmem:[#allocation10 + $0x2c] sm:$0xf]
    %v486 = vld [vmem:[#allocation10 + $0x30] sm:$0xf]
    %v487 = vld [vmem:[#allocation10 + $0x34] sm:$0xf]
    %v488 = vld [vmem:[#allocation10 + $0x38] sm:$0xf]
    %v489 = vld [vmem:[#allocation10 + $0x3c] sm:$0xf]
    %v490 = vld [vmem:[%s8] sm:$0x1]
    %v492 = vlaneseq
    %v493 = vshrl.u32 %v492, 7
    %v494 = vsub.s32 0, %v493
    %v495 = vrot.slane %v490, %v494
    %v513 = vunpack.c.l.b16 %v474
    %v514 = vunpack.c.l.b16 %v475
    %v515 = vunpack.c.l.b16 %v476
    %v516 = vunpack.c.l.b16 %v477
    %v517 = vunpack.c.l.b16 %v478
    %v518 = vunpack.c.l.b16 %v479
    %v519 = vunpack.c.l.b16 %v480
    %v520 = vunpack.c.l.b16 %v481
    %v521 = vunpack.c.l.b16 %v482
    %v522 = vunpack.c.l.b16 %v483
    %v523 = vunpack.c.l.b16 %v484
    %v524 = vunpack.c.l.b16 %v485
    %v525 = vunpack.c.l.b16 %v486
    %v526 = vunpack.c.l.b16 %v487
    %v527 = vunpack.c.l.b16 %v488
    %v528 = vunpack.c.l.b16 %v489
    %v529 = vpack.c.b16 %v514, %v513
    %v530 = vpack.c.b16 %v516, %v515
    %v531 = vpack.c.b16 %v518, %v517
    %v532 = vpack.c.b16 %v520, %v519
    %v533 = vpack.c.b16 %v522, %v521
    %v534 = vpack.c.b16 %v524, %v523
    %v535 = vpack.c.b16 %v526, %v525
    %v536 = vpack.c.b16 %v528, %v527
    %545 = vmatprep.subr.bf16.mxu0 0
    %546 = vmatpush1.bf16.msra.mxu0 %v529
    %547 = vmatprep.subr.bf16.mxu0 0
    %548 = vmatpush1.bf16.msra.mxu0 %v530
    %549 = vmatprep.subr.bf16.mxu0 0
    %550 = vmatpush1.bf16.msra.mxu0 %v531
    %551 = vmatprep.subr.bf16.mxu0 0
    %552 = vmatpush1.bf16.msra.mxu0 %v532
    %553 = vmatprep.subr.bf16.mxu0 0
    %554 = vmatpush1.bf16.msra.mxu0 %v533
    %555 = vmatprep.subr.bf16.mxu0 0
    %556 = vmatpush1.bf16.msra.mxu0 %v534
    %557 = vmatprep.subr.bf16.mxu0 0
    %558 = vmatpush1.bf16.msra.mxu0 %v535
    %559 = vmatprep.subr.bf16.mxu0 0
    %560 = vmatpush1.bf16.msra.mxu0 %v536
    %561 = vmatprep.subr.bf16.mxu0 0
    %562 = vmatpush1.bf16.msra.mxu0 0
    %563 = vmatprep.subr.bf16.mxu0 0
    %564 = vmatpush1.bf16.msra.mxu0 0
    %565 = vmatprep.subr.bf16.mxu0 0
    %566 = vmatpush1.bf16.msra.mxu0 0
    %567 = vmatprep.subr.bf16.mxu0 0
    %568 = vmatpush1.bf16.msra.mxu0 0
    %569 = vmatprep.subr.bf16.mxu0 0
    %570 = vmatpush1.bf16.msra.mxu0 0
    %571 = vmatprep.subr.bf16.mxu0 0
    %572 = vmatpush1.bf16.msra.mxu0 0
    %573 = vmatprep.subr.bf16.mxu0 0
    %574 = vmatpush1.bf16.msra.mxu0 0
    %575 = vmatprep.subr.bf16.mxu0 0
    %576 = vmatpush1.bf16.msra.mxu0 0
    %577 = vmatprep.mubr.bf16.mxu0 0
    %578 = vmatmul.mubr.bf16.gmra.mrb[0].mxu0 %v473
    %v579 = vpop.f32.mrb[0].mxu0
    %v580 = vadd.f32 %v495, %v579
    %v581 = vpop.f32.mrb[0].mxu0
    %v582 = vpop.f32.mrb[0].mxu0
    %v583 = vadd.f32 %v495, %v582
    %v584 = vpop.f32.mrb[0].mxu0
    %585 = vdwg.mxu0
    %586 = vst [vmem:[#allocation11] sm:$0xff] %v580
    %587 = vst [vmem:[#allocation11 + $0x8] sm:$0xff] %v583
    // Predicated region
    $region58: #{tpu_custom_call.1} parent=1 // pred_check
      _
    $region59: #{tpu_custom_call.1} parent=1 // pred_check_branch
      %589 = sbr.rel (0) target = $region61
    $region60: #{tpu_custom_call.1} parent=1 // pred_region
      %s591 = ssub.s32 256, 256
      %592 = vsyncadd [#allocation4], %s591
      %s593 = sshll.u32 [#allocation11], 4
      %s594 = int_to_ptr.vmem [resolvable:$true] %s593
      %599 = dma.vmem_to_hbm [thread:$0]  %s594, 256, %s9, [#allocation4], 128, 128, 8
    $region61: #{tpu_custom_call.1} parent=1 // pred_fallthru
      _
    // Predicated region
    $region62: #{tpu_custom_call.1} parent=1 // pred_check
      _
    $region63: #{tpu_custom_call.1} parent=1 // pred_check_branch
      %601 = sbr.rel (0) target = $region65
    $region64: #{tpu_custom_call.1} parent=1 // pred_region
      %602 = dma.done [#allocation4], 256
    $region65: #{tpu_custom_call.1} parent=1 // pred_fallthru
      _
    %603 = vsyncpa [#allocation3], 1
    %604 = vsyncpa [#allocation6], 1
    %605 = vsyncpa [#allocation9], 1
    %606 = vsyncpa [#allocation4], 1

</llo_original>
